<compile_context>
chip_gen: v7x
topology: tpu7x:2x2x1
jax: 0.10.0
libtpu: 0.0.40
codegen_flags: <defaults>
</compile_context>

<pallas_src>
import functools

import jax
import jax.numpy as jnp
from jax.experimental import pallas as pl
from jax.experimental.pallas import tpu as pltpu


def _attention_pooling_kernel(q_ref, x_ref, o_ref, *, block_batch):
    """One grid step pools `block_batch` batch rows.

    q_ref: (A, D)                 query vectors (shared across the batch)
    x_ref: (block_batch, N, D)    tokens of this batch block
    o_ref: (block_batch, A, D)    pooled outputs
    """
    q = q_ref[...]                               # hoisted out of the loop

    def body(b, carry):
        x_b = x_ref[b]                           # (N, D): leading-dim slice, tile aligned
        # scores on the MXU, contracting the embedding dim directly (no x.T copy)
        s = jax.lax.dot_general(
            q, x_b, (((1,), (1,)), ((), ())),
            preferred_element_type=jnp.float32)  # (A, N) f32, N in lanes
        # numerically-stable softmax; normalization deferred past the 2nd matmul
        m = jnp.max(s, axis=-1, keepdims=True)
        e = jnp.exp(s - m)
        denom = jnp.sum(e, axis=-1, keepdims=True)
        # un-normalized pooling on the MXU, f32 accumulation
        # TODO(synk): for bf16 inputs the softmax weights are downcast to bf16
        # here (MXU-native); accumulation stays f32 via preferred_element_type.
        acc = jnp.dot(e.astype(x_b.dtype), x_b,
                      preferred_element_type=jnp.float32)        # (A, D) f32
        # EUP approximate reciprocal + one Newton step ((A,1) only -> ~free,
        # restores near-full f32 precision)
        inv = pl.reciprocal(denom, approx=True)
        inv = inv * (2.0 - denom * inv)
        o_ref[b] = (acc * inv).astype(o_ref.dtype)
        return carry

    # full unroll for small blocks (LLO visibility); partial unroll for large
    # blocks so per-iteration intermediates don't all stay live at once
    unroll = True if block_batch <= 8 else 4
    jax.lax.fori_loop(0, block_batch, body, None, unroll=unroll)


def _vmem_capacity_bytes(default=64 * 1024 * 1024):
    """Physical VMEM of the attached TPU; conservative 64 MiB (v7x) fallback."""
    try:
        cap = getattr(pltpu.get_tpu_info(), "vmem_capacity_bytes", None)
        if cap:
            return int(cap)
    except Exception:
        pass
    return default


def attention_pooling(query_vectors, common_representations, *,
                      block_batch=None, vmem_limit_bytes=None):
    """query_vectors: (A, D); common_representations: (B, N, D) -> (B, A, D)."""
    A, D = query_vectors.shape
    B, N, Dx = common_representations.shape
    assert D == Dx
    dtype = common_representations.dtype
    itemsize = jnp.dtype(dtype).itemsize

    # Generation-aware budget: spend ~half the physical VMEM on our
    # (double-buffered) blocks -> ~64 MiB on v5e/v6e (128 MiB parts), ~32 MiB on
    # v7x (64 MiB).  Scoped limit is set above the budget for compiler scratch.
    vmem_cap = _vmem_capacity_bytes()
    budget = vmem_cap // 2
    if vmem_limit_bytes is None:
        vmem_limit_bytes = int(vmem_cap * 3 // 4)

    # Grow block_batch upward to fill the budget (fewer ~0.35us grid steps,
    # larger contiguous token DMAs), then:
    #   * cap so the grid keeps >= 2 steps (v7x: 2 TensorCores, axis "parallel")
    #   * snap down to a divisor of B so no host-side pad/copy of x is needed.
    if block_batch is None:
        per_row = 2 * N * D * itemsize + 2 * A * D * itemsize   # dbl-buffered x + out
        fixed = (2 * A * D * itemsize            # queries (double-buffered, tiny)
                 + 4 * A * N * 4 + 4 * A * D * 4  # loop-local f32 intermediates
                 + (1 << 20))                    # slack
        block_batch = max(1, (budget - fixed) // per_row)
    block_batch = int(max(1, min(block_batch, B)))
    if B >= 2:
        block_batch = max(1, min(block_batch, B // 2))   # >= 2 grid steps
    while B % block_batch != 0:                          # exact tiling, no pad
        block_batch -= 1
    # TODO(synk): for a large prime B this degrades to block_batch=1; a
    # clamped/ragged last block would avoid that without padding x.

    grid = (B // block_batch,)
    kernel = functools.partial(_attention_pooling_kernel, block_batch=block_batch)

    cost = pl.CostEstimate(
        flops=4 * B * A * N * D,                    # two matmuls
        transcendentals=B * A * N + B * A,          # exp + reciprocal
        bytes_accessed=(B * N * D + A * D + B * A * D) * itemsize,
    )

    # Block dims equal to the full array dims (N, D, A) are exempt from the
    # (8,128) divisibility rule, so no padding of A or D is required anywhere.
    return pl.pallas_call(
        kernel,
        out_shape=jax.ShapeDtypeStruct((B, A, D), dtype),
        grid_spec=pltpu.PrefetchScalarGridSpec(
            num_scalar_prefetch=0,
            grid=grid,
            in_specs=[
                pl.BlockSpec((A, D), lambda b: (0, 0)),                   # queries
                pl.BlockSpec((block_batch, N, D), lambda b: (b, 0, 0)),   # tokens
            ],
            out_specs=pl.BlockSpec((block_batch, A, D), lambda b: (b, 0, 0)),
        ),
        compiler_params=pltpu.CompilerParams(
            dimension_semantics=("parallel",),
            vmem_limit_bytes=int(vmem_limit_bytes),
        ),
        cost_estimate=cost,
    )(query_vectors, common_representations)


def _xavier_uniform(key, shape, dtype=jnp.float32):
    # matches nn.init.xavier_uniform_ for a 2-D parameter (fan_out, fan_in) = shape
    fan_out, fan_in = shape
    bound = (6.0 / (fan_in + fan_out)) ** 0.5
    return jax.random.uniform(key, shape, dtype=dtype, minval=-bound, maxval=bound)


def _reference(query_vectors, x):
    scores = jnp.einsum("ad,bnd->ban", query_vectors, x)
    weights = jax.nn.softmax(scores, axis=-1)
    return jnp.einsum("ban,bnd->bad", weights, x)


if __name__ == "__main__":
    key = jax.random.PRNGKey(0)
    k_q, k_x = jax.random.split(key)

    batch = 2
    num_tokens = 8
    d_embedding = 32
    num_abnormalities = 4

    query_vectors = _xavier_uniform(k_q, (num_abnormalities, d_embedding))
    x = jax.random.normal(k_x, (batch, num_tokens, d_embedding), dtype=jnp.float32)

    out = attention_pooling(query_vectors, x)
    out = jax.block_until_ready(out)

    ref = _reference(query_vectors, x)
    assert out.shape == (batch, num_abnormalities, d_embedding)
    # tolerance covers MXU f32 accumulation + Newton-refined approx reciprocal
    assert jnp.allclose(out, ref, atol=1e-4, rtol=1e-4), "mismatch vs reference"

    print("KERNEL_OK")
</pallas_src>

<mosaic_0001>
module attributes {stable_mosaic.version = 11 : i64} {
  func.func @_attention_pooling_kernel(%arg0: i32, %arg1: memref<4x32xf32, #tpu.memory_space<vmem>>, %arg2: memref<1x8x32xf32, #tpu.memory_space<vmem>>, %arg3: memref<1x4x32xf32, #tpu.memory_space<vmem>>) attributes {dimension_semantics = [#tpu.dimension_semantics<parallel>], iteration_bounds = array<i64: 2>, scalar_prefetch = 0 : i64, scratch_operands = 0 : i64, tpu.core_type = #tpu.core_type<tc>, window_params = [{pipeline_mode = #tpu.pipeline_mode<synchronous>, transform_indices = @transform_0, window_bounds = array<i64: 4, 32>}, {transform_indices = @transform_1, window_bounds = array<i64: 1, 8, 32>}, {transform_indices = @transform_2, window_bounds = array<i64: 1, 4, 32>}]} {
    %c0 = arith.constant 0 : index
    %c0_0 = arith.constant 0 : index
    %0 = vector.load %arg1[%c0, %c0_0] : memref<4x32xf32, #tpu.memory_space<vmem>>, vector<4x32xf32>
    %c0_i32 = arith.constant 0 : i32
    %1 = arith.index_cast %c0_i32 : i32 to index
    %c0_1 = arith.constant 0 : index
    %c0_2 = arith.constant 0 : index
    %2 = vector.load %arg2[%1, %c0_1, %c0_2] : memref<1x8x32xf32, #tpu.memory_space<vmem>>, vector<1x8x32xf32>
    %3 = vector.shape_cast %2 : vector<1x8x32xf32> to vector<8x32xf32>
    %cst = arith.constant dense<0.000000e+00> : vector<4x8xf32>
    %4 = tpu.matmul %0, %3, %cst {dimension_numbers = #tpu.dot_dimension_numbers<[1], [1], [0], [0], [0, 0, 1, 0], [], []>} : vector<4x32xf32>, vector<8x32xf32>, vector<4x8xf32> -> vector<4x8xf32>
    %cst_3 = arith.constant dense<0xFF800000> : vector<4xf32>
    %5 = vector.multi_reduction <maximumf>, %4, %cst_3 [1] : vector<4x8xf32> to vector<4xf32>
    %6 = vector.shape_cast %5 : vector<4xf32> to vector<4x1xf32>
    %7 = vector.broadcast %6 : vector<4x1xf32> to vector<4x8xf32>
    %8 = arith.subf %4, %7 : vector<4x8xf32>
    %9 = math.exp %8 : vector<4x8xf32>
    %cst_4 = arith.constant dense<0.000000e+00> : vector<4xf32>
    %10 = vector.multi_reduction <add>, %9, %cst_4 [1] : vector<4x8xf32> to vector<4xf32>
    %11 = vector.shape_cast %10 : vector<4xf32> to vector<4x1xf32>
    %cst_5 = arith.constant dense<0.000000e+00> : vector<4x32xf32>
    %12 = tpu.matmul %9, %3, %cst_5 {dimension_numbers = #tpu.dot_dimension_numbers<[1], [0], [0], [1], [0, 0, 1, 1], [], []>} : vector<4x8xf32>, vector<8x32xf32>, vector<4x32xf32> -> vector<4x32xf32>
    %13 = tpu.reciprocal %11 {approx = true} : vector<4x1xf32> -> vector<4x1xf32>
    %14 = arith.mulf %11, %13 : vector<4x1xf32>
    %cst_6 = arith.constant 2.000000e+00 : f32
    %15 = vector.broadcast %cst_6 : f32 to vector<4x1xf32>
    %16 = arith.subf %15, %14 : vector<4x1xf32>
    %17 = arith.mulf %13, %16 : vector<4x1xf32>
    %18 = vector.broadcast %17 : vector<4x1xf32> to vector<4x32xf32>
    %19 = arith.mulf %12, %18 : vector<4x32xf32>
    %20 = arith.index_cast %c0_i32 : i32 to index
    %c0_7 = arith.constant 0 : index
    %c0_8 = arith.constant 0 : index
    %21 = vector.load %arg3[%20, %c0_7, %c0_8] : memref<1x4x32xf32, #tpu.memory_space<vmem>>, vector<1x4x32xf32>
    %22 = vector.shape_cast %21 : vector<1x4x32xf32> to vector<4x32xf32>
    %23 = vector.shape_cast %19 : vector<4x32xf32> to vector<1x4x32xf32>
    tpu.vector_store %arg3[%20, %c0_7, %c0_8], %23 {strides = array<i32>} : memref<1x4x32xf32, #tpu.memory_space<vmem>>, vector<1x4x32xf32>,
    %c1_i32 = arith.constant 1 : i32
    return
  }
  func.func @transform_0(%arg0: i32) -> (i32, i32) {
    %c0_i32 = arith.constant 0 : i32
    %c0_i32_0 = arith.constant 0 : i32
    %c0_i32_1 = arith.constant 0 : i32
    return %c0_i32, %c0_i32_0 : i32, i32
  }
  func.func @transform_1(%arg0: i32) -> (i32, i32, i32) {
    %c0_i32 = arith.constant 0 : i32
    %c0_i32_0 = arith.constant 0 : i32
    %c0_i32_1 = arith.constant 0 : i32
    return %arg0, %c0_i32, %c0_i32_0 : i32, i32, i32
  }
  func.func @transform_2(%arg0: i32) -> (i32, i32, i32) {
    %c0_i32 = arith.constant 0 : i32
    %c0_i32_0 = arith.constant 0 : i32
    %c0_i32_1 = arith.constant 0 : i32
    return %arg0, %c0_i32, %c0_i32_0 : i32, i32, i32
  }
}

</mosaic_0001>

<llo_original>
// kernel: tpu_custom_call.1
$region0: #{tpu_custom_call.1}
  #allocation0 [shape = 'u32[]', space=smem, size = 0x4, offset = 0x4, fixed_abs, tag = 'smem constant byte address 0x4 - core index']
  #allocation1 [shape = 'u32[144,128]{1,0:T(1,128)}', space=vmem, size = 0x12000, scoped, tag = 'internal scratch']
  %s0 = inlined_call_operand.hbm [shape: f32[4,32], index: 0, kind: input, shape index: {}]
  %s1 = inlined_call_operand.hbm [shape: f32[2,8,32], index: 1, kind: input, shape index: {}]
  %s2 = inlined_call_operand.hbm [shape: f32[2,4,32], index: 2, kind: output, shape index: {}]
  %s3 = sld [smem:[#allocation0]]
  $region49: #{tpu_custom_call.1} parent=0
    _
  %s5 = ssub.s32 1, %s3
  %s6 = scalar_select 0, %s5, %s3
  $region1: #{tpu_custom_call.1} parent=0
    #allocation2 [shape = 'u8[2048]{0}', space=vmem, size = 0x800, scoped, tag = 'input window, operand 0, single buffered']
    #allocation3 [shape = 's32[2]{0}', space=sflag, size = 0x8, scoped, tag = 'scoped memory for tpu_custom_call.1']
    #allocation4 [shape = 's32[2]{0}', space=sflag, size = 0x8, scoped, tag = 'scoped memory for tpu_custom_call.1']
    #allocation5 [shape = 'u8[8192]{0}', space=vmem, size = 0x2000, scoped, tag = 'input window, operand 1']
    #allocation6 [shape = 's32[2]{0}', space=sflag, size = 0x8, scoped, tag = 'scoped memory for tpu_custom_call.1']
    #allocation7 [shape = 'u8[4096]{0}', space=vmem, size = 0x1000, scoped, tag = 'output window, operand 0']
    %7 = vsyncpa [#allocation3], 0
    %8 = vsyncpa [#allocation6], 0
    %s9 = scalar_lea.sflag [#allocation6], 1
    %10 = vsyncpa %s9, 0
    %11 = vsyncpa [#allocation4], 0
    %s12 = scalar_lea.sflag [#allocation4], 1
    %13 = vsyncpa %s12, 0
    loop: start=0, step=1, limit=4
    $region2: #{tpu_custom_call.1} parent=1 // loop_pre_header
      _
    $region3: #{tpu_custom_call.1} parent=1 // loop_header
      %s15 = sphi 0, %s19
      %p16 = scmp.ge.s32.totalorder %s15, 4
      %s23 = sphi 0, %s23
      %s25 = sphi 0, %s23
      %s26 = sphi 0, %s25
      %s40 = sphi 0, %s26
      %s46 = sphi 0, %s48
      %s49 = sphi 0, %s46
      %s50 = sphi 0, %s49
      %s66 = sphi 0, %s50
      %s72 = sphi 0, %s74
      %s75 = sphi 0, %s72
      %s76 = sphi 0, %s75
      %s92 = sphi 0, %s76
    $region4: #{tpu_custom_call.1} parent=1 // loop_header_branch
      %18 = sbr.rel (%p16) target = $region8
    $region5: #{tpu_custom_call.1} parent=1 // loop_body
      %s20 = ssub.s32 %s15, 1
      %s21 = ssub.s32 %s15, 2
      %s22 = sadd.s32 %s15, 1
      %s24 = sadd.s32 %s23, 1
      %p27 = scmp.eq.s32.totalorder %s15, 1
      %p28 = scmp.ne.s32.totalorder %s23, %s25
      %p29 = scmp.eq.s32.totalorder %s15, 0
      %p30 = por %p28, %p29
      %p31 = scmp.ne.s32.totalorder %s23, %s25
      %p32 = scmp.eq.s32.totalorder %s20, 1
      %p33 = por %p31, %p32
      %p34 = scmp.ne.s32.totalorder %s25, %s26
      %p35 = scmp.eq.s32.totalorder %s20, 0
      %p36 = por %p34, %p35
      %p37 = scmp.ne.s32.totalorder %s25, %s26
      %p38 = scmp.eq.s32.totalorder %s21, 1
      %p39 = por %p37, %p38
      %p41 = scmp.ne.s32.totalorder %s26, %s40
      %p42 = scmp.eq.s32.totalorder %s21, 0
      %p43 = por %p41, %p42
      %s44 = ssub.s32 %s15, %s22
      %p45 = scmp.eq.s32.totalorder %s44, 0
      %s47 = sadd.s32 %s46, 1
      %s48 = scalar_select %p45, %s46, %s47
      %p51 = pneg %p45
      %p52 = scmp.eq.s32.totalorder %s15, 1
      %p53 = por %p51, %p52
      %p54 = scmp.ne.s32.totalorder %s46, %s49
      %p55 = scmp.eq.s32.totalorder %s15, 0
      %p56 = por %p54, %p55
      %p57 = scmp.ne.s32.totalorder %s46, %s49
      %p58 = scmp.eq.s32.totalorder %s20, 1
      %p59 = por %p57, %p58
      %p60 = scmp.ne.s32.totalorder %s49, %s50
      %p61 = scmp.eq.s32.totalorder %s20, 0
      %p62 = por %p60, %p61
      %p63 = scmp.ne.s32.totalorder %s49, %s50
      %p64 = scmp.eq.s32.totalorder %s21, 1
      %p65 = por %p63, %p64
      %p67 = scmp.ne.s32.totalorder %s50, %s66
      %p68 = scmp.eq.s32.totalorder %s21, 0
      %p69 = por %p67, %p68
      %s70 = ssub.s32 %s15, %s22
      %p71 = scmp.eq.s32.totalorder %s70, 0
      %s73 = sadd.s32 %s72, 1
      %s74 = scalar_select %p71, %s72, %s73
      %p77 = pneg %p71
      %p78 = scmp.eq.s32.totalorder %s15, 1
      %p79 = por %p77, %p78
      %p80 = scmp.ne.s32.totalorder %s72, %s75
      %p81 = scmp.eq.s32.totalorder %s15, 0
      %p82 = por %p80, %p81
      %p83 = scmp.ne.s32.totalorder %s72, %s75
      %p84 = scmp.eq.s32.totalorder %s20, 1
      %p85 = por %p83, %p84
      %p86 = scmp.ne.s32.totalorder %s75, %s76
      %p87 = scmp.eq.s32.totalorder %s20, 0
      %p88 = por %p86, %p87
      %p89 = scmp.ne.s32.totalorder %s75, %s76
      %p90 = scmp.eq.s32.totalorder %s21, 1
      %p91 = por %p89, %p90
      %p93 = scmp.ne.s32.totalorder %s76, %s92
      %p94 = scmp.eq.s32.totalorder %s21, 0
      %p95 = por %p93, %p94
      %p96 = scmp.le.s32.totalorder 1, %s15
      %p97 = scmp.lt.s32.totalorder %s15, 3
      %p98 = pnand %p96, %p97
      %p99 = pneg %p98
      // Predicated region
      $region9: #{tpu_custom_call.1} parent=5 // pred_check
        _
      $region10: #{tpu_custom_call.1} parent=5 // pred_check_branch
        %101 = sbr.rel (%p98) target = $region12
      $region11: #{tpu_custom_call.1} parent=5 // pred_region
        %s102 = ssub.s32 %s15, 1
        // Predicated region
        $region13: #{tpu_custom_call.1} parent=11 // pred_check
          %p103 = pneg %p36
        $region14: #{tpu_custom_call.1} parent=11 // pred_check_branch
          %105 = sbr.rel (%p103) target = $region16
        $region15: #{tpu_custom_call.1} parent=11 // pred_region
          %s107 = ssub.s32 64, 64
          %108 = vsyncadd [#allocation3], %s107
          %s110 = sshll.u32 [#allocation2], 4
          %s111 = int_to_ptr.vmem [resolvable:$true] %s110
          %113 = dma.hbm_to_vmem [thread:$0]  %s0, 64, %s111, [#allocation3]
        $region16: #{tpu_custom_call.1} parent=11 // pred_fallthru
          _
      $region12: #{tpu_custom_call.1} parent=5 // pred_fallthru
        _
      %p114 = scmp.lt.s32.totalorder %s15, 2
      // Predicated region
      $region17: #{tpu_custom_call.1} parent=5 // pred_check
        %p115 = pneg %p114
      $region18: #{tpu_custom_call.1} parent=5 // pred_check_branch
        %117 = sbr.rel (%p115) target = $region20
      $region19: #{tpu_custom_call.1} parent=5 // pred_region
        // Predicated region
        $region21: #{tpu_custom_call.1} parent=19 // pred_check
          %p118 = pneg %p56
        $region22: #{tpu_custom_call.1} parent=19 // pred_check_branch
          %120 = sbr.rel (%p118) target = $region24
        $region23: #{tpu_custom_call.1} parent=19 // pred_region
          %s121 = sand.u32 %s46, 1
          %s122 = scalar_lea.sflag [#allocation6], %s121
          %s123 = sand.u32 %s46, 1
          %s124 = smul.addr %s123, 8
          %s125 = scalar_lea.vmem [#allocation5], %s124
          %s127 = ssub.s32 128, 128
          %128 = vsyncadd %s122, %s127
          %s129 = smul.addr %s15, 128
          %s130 = scalar_lea.hbm %s1, %s129
          %s132 = sshll.u32 %s125, 4
          %s133 = int_to_ptr.vmem [resolvable:$true] %s132
          %135 = dma.hbm_to_vmem [thread:$0]  %s130, 128, %s133, %s122
        $region24: #{tpu_custom_call.1} parent=19 // pred_fallthru
          _
      $region20: #{tpu_custom_call.1} parent=5 // pred_fallthru
        _
      %p136 = scmp.le.s32.totalorder 1, %s15
      %p137 = scmp.lt.s32.totalorder %s15, 3
      %p138 = pnand %p136, %p137
      %p139 = pneg %p138
      // Predicated region
      $region25: #{tpu_custom_call.1} parent=5 // pred_check
        _
      $region26: #{tpu_custom_call.1} parent=5 // pred_check_branch
        %141 = sbr.rel (%p138) target = $region28
      $region27: #{tpu_custom_call.1} parent=5 // pred_region
        %s142 = ssub.s32 %s15, 1
        // Predicated region
        $region29: #{tpu_custom_call.1} parent=27 // pred_check
          %p143 = pneg %p36
        $region30: #{tpu_custom_call.1} parent=27 // pred_check_branch
          %145 = sbr.rel (%p143) target = $region32
        $region31: #{tpu_custom_call.1} parent=27 // pred_region
          %146 = dma.done [#allocation3], 64
        $region32: #{tpu_custom_call.1} parent=27 // pred_fallthru
          _
        %s147 = sand.u32 %s49, 1
        %s148 = scalar_lea.sflag [#allocation6], %s147
        %s149 = sand.u32 %s49, 1
        %s150 = smul.addr %s149, 8
        %s151 = scalar_lea.vmem [#allocation5], %s150
        // Predicated region
        $region33: #{tpu_custom_call.1} parent=27 // pred_check
          %p152 = pneg %p62
        $region34: #{tpu_custom_call.1} parent=27 // pred_check_branch
          %154 = sbr.rel (%p152) target = $region36
        $region35: #{tpu_custom_call.1} parent=27 // pred_region
          %155 = dma.done %s148, 128
        $region36: #{tpu_custom_call.1} parent=27 // pred_fallthru
          _
        %p156 = pneg %p36
        %p157 = pneg %p33
        %s158 = sand.u32 %s49, 1
        %s159 = scalar_lea.sflag [#allocation6], %s158
        %s160 = sand.u32 %s49, 1
        %s161 = smul.addr %s160, 8
        %s162 = scalar_lea.vmem [#allocation5], %s161
        %p163 = pneg %p62
        %p164 = pneg %p59
        %p165 = pneg %p88
        %p166 = pneg %p85
        %s167 = sand.u32 %s75, 1
        %s168 = scalar_lea.sflag [#allocation4], %s167
        %s169 = sand.u32 %s75, 1
        %s170 = smul.addr %s169, 4
        %s171 = scalar_lea.vmem [#allocation7], %s170
        %v172 = vld [vmem:[#allocation2] sm:$0xf]
        %v173 = vld [vmem:[%s151] sm:$0xff]
        %vm174 = vcmask 261120
        %v176 = vsel %vm174, %v172, 0
        %v179 = vsel %vm174, %v173, 0
        %181 = vmatprep.subr.mxu0 0.0
        %182 = vmatpush1.xpose.msra.mxu0 %v179
        %183 = vmatprep.subr.mxu0 0.0
        %184 = vmatpush1.xpose.msra.mxu0 0.0
        %185 = vmatprep.subr.mxu0 0.0
        %186 = vmatpush1.xpose.msra.mxu0 0.0
        %187 = vmatprep.subr.mxu0 0.0
        %188 = vmatpush1.xpose.msra.mxu0 0.0
        %189 = vmatprep.subr.mxu0 0.0
        %190 = vmatpush1.xpose.msra.mxu0 0.0
        %191 = vmatprep.subr.mxu0 0.0
        %192 = vmatpush1.xpose.msra.mxu0 0.0
        %193 = vmatprep.subr.mxu0 0.0
        %194 = vmatpush1.xpose.msra.mxu0 0.0
        %195 = vmatprep.subr.mxu0 0.0
        %196 = vmatpush1.xpose.msra.mxu0 0.0
        %197 = vmatprep.subr.mxu0 0.0
        %198 = vmatpush1.xpose.msra.mxu0 0.0
        %199 = vmatprep.subr.mxu0 0.0
        %200 = vmatpush1.xpose.msra.mxu0 0.0
        %201 = vmatprep.subr.mxu0 0.0
        %202 = vmatpush1.xpose.msra.mxu0 0.0
        %203 = vmatprep.subr.mxu0 0.0
        %204 = vmatpush1.xpose.msra.mxu0 0.0
        %205 = vmatprep.subr.mxu0 0.0
        %206 = vmatpush1.xpose.msra.mxu0 0.0
        %207 = vmatprep.subr.mxu0 0.0
        %208 = vmatpush1.xpose.msra.mxu0 0.0
        %209 = vmatprep.subr.mxu0 0.0
        %210 = vmatpush1.xpose.msra.mxu0 0.0
        %211 = vmatprep.subr.mxu0 0.0
        %212 = vmatpush1.xpose.msra.mxu0 0.0
        %213 = vmatprep.subr.mxu0 0.0
        %214 = vmatpush1.xpose.msra.mxu0 0.0
        %215 = vmatprep.subr.mxu0 0.0
        %216 = vmatpush1.xpose.msra.mxu0 0.0
        %217 = vmatprep.subr.mxu0 0.0
        %218 = vmatpush1.xpose.msra.mxu0 0.0
        %219 = vmatprep.subr.mxu0 0.0
        %220 = vmatpush1.xpose.msra.mxu0 0.0
        %221 = vmatprep.subr.mxu0 0.0
        %222 = vmatpush1.xpose.msra.mxu0 0.0
        %223 = vmatprep.subr.mxu0 0.0
        %224 = vmatpush1.xpose.msra.mxu0 0.0
        %225 = vmatprep.subr.mxu0 0.0
        %226 = vmatpush1.xpose.msra.mxu0 0.0
        %227 = vmatprep.subr.mxu0 0.0
        %228 = vmatpush1.xpose.msra.mxu0 0.0
        %229 = vmatprep.subr.mxu0 0.0
        %230 = vmatpush1.xpose.msra.mxu0 0.0
        %231 = vmatprep.subr.mxu0 0.0
        %232 = vmatpush1.xpose.msra.mxu0 0.0
        %233 = vmatprep.subr.mxu0 0.0
        %234 = vmatpush1.xpose.msra.mxu0 0.0
        %235 = vmatprep.subr.mxu0 0.0
        %236 = vmatpush1.xpose.msra.mxu0 0.0
        %237 = vmatprep.subr.mxu0 0.0
        %238 = vmatpush1.xpose.msra.mxu0 0.0
        %239 = vmatprep.subr.mxu0 0.0
        %240 = vmatpush1.xpose.msra.mxu0 0.0
        %241 = vmatprep.subr.mxu0 0.0
        %242 = vmatpush1.xpose.msra.mxu0 0.0
        %243 = vmatprep.subr.mxu0 0.0
        %244 = vmatpush1.xpose.msra.mxu0 0.0
        %245 = vmatprep.mubr.f32.mxu0 0.0
        %246 = vmatmul.mubr.f32.gmra.mrb[0].mxu0 %v176
        %v247 = vpop.f32.mrb[0].mxu0
        %v248 = vadd.f32 0.0, %v247
        %v249 = vpop.f32.mrb[0].mxu0
        %250 = vdwg.mxu0
        %vm251 = vcmask 60416
        %v252 = vsel %vm251, %v248, -inf
        %253 = vmax.xlane.f32.xlu0 %v252
        %v254 = vpop.xlane.xlu0 %253
        %v255 = vsub.f32 %v248, %v254
        %v256 = vmul.f32 %v255, 1.442695
        %v257 = vpow.pop %v256
        %v258 = vsel %vm251, %v257, 0.0
        %259 = vadd.xlane.f32.xlu0 %v258
        %v260 = vpop.xlane.xlu0 %259
        %vm261 = vcmask 64512
        %v263 = vsel %vm261, %v257, 0
        %265 = vmatprep.subr.mxu0 0.0
        %266 = vmatpush1.msra.mxu0 %v173
        %267 = vmatprep.subr.mxu0 0.0
        %268 = vmatpush1.msra.mxu0 0.0
        %269 = vmatprep.subr.mxu0 0.0
        %270 = vmatpush1.msra.mxu0 0.0
        %271 = vmatprep.subr.mxu0 0.0
        %272 = vmatpush1.msra.mxu0 0.0
        %273 = vmatprep.subr.mxu0 0.0
        %274 = vmatpush1.msra.mxu0 0.0
        %275 = vmatprep.subr.mxu0 0.0
        %276 = vmatpush1.msra.mxu0 0.0
        %277 = vmatprep.subr.mxu0 0.0
        %278 = vmatpush1.msra.mxu0 0.0
        %279 = vmatprep.subr.mxu0 0.0
        %280 = vmatpush1.msra.mxu0 0.0
        %281 = vmatprep.subr.mxu0 0.0
        %282 = vmatpush1.msra.mxu0 0.0
        %283 = vmatprep.subr.mxu0 0.0
        %284 = vmatpush1.msra.mxu0 0.0
        %285 = vmatprep.subr.mxu0 0.0
        %286 = vmatpush1.msra.mxu0 0.0
        %287 = vmatprep.subr.mxu0 0.0
        %288 = vmatpush1.msra.mxu0 0.0
        %289 = vmatprep.subr.mxu0 0.0
        %290 = vmatpush1.msra.mxu0 0.0
        %291 = vmatprep.subr.mxu0 0.0
        %292 = vmatpush1.msra.mxu0 0.0
        %293 = vmatprep.subr.mxu0 0.0
        %294 = vmatpush1.msra.mxu0 0.0
        %295 = vmatprep.subr.mxu0 0.0
        %296 = vmatpush1.msra.mxu0 0.0
        %297 = vmatprep.subr.mxu0 0.0
        %298 = vmatpush1.msra.mxu0 0.0
        %299 = vmatprep.subr.mxu0 0.0
        %300 = vmatpush1.msra.mxu0 0.0
        %301 = vmatprep.subr.mxu0 0.0
        %302 = vmatpush1.msra.mxu0 0.0
        %303 = vmatprep.subr.mxu0 0.0
        %304 = vmatpush1.msra.mxu0 0.0
        %305 = vmatprep.subr.mxu0 0.0
        %306 = vmatpush1.msra.mxu0 0.0
        %307 = vmatprep.subr.mxu0 0.0
        %308 = vmatpush1.msra.mxu0 0.0
        %309 = vmatprep.subr.mxu0 0.0
        %310 = vmatpush1.msra.mxu0 0.0
        %311 = vmatprep.subr.mxu0 0.0
        %312 = vmatpush1.msra.mxu0 0.0
        %313 = vmatprep.subr.mxu0 0.0
        %314 = vmatpush1.msra.mxu0 0.0
        %315 = vmatprep.subr.mxu0 0.0
        %316 = vmatpush1.msra.mxu0 0.0
        %317 = vmatprep.subr.mxu0 0.0
        %318 = vmatpush1.msra.mxu0 0.0
        %319 = vmatprep.subr.mxu0 0.0
        %320 = vmatpush1.msra.mxu0 0.0
        %321 = vmatprep.subr.mxu0 0.0
        %322 = vmatpush1.msra.mxu0 0.0
        %323 = vmatprep.subr.mxu0 0.0
        %324 = vmatpush1.msra.mxu0 0.0
        %325 = vmatprep.subr.mxu0 0.0
        %326 = vmatpush1.msra.mxu0 0.0
        %327 = vmatprep.subr.mxu0 0.0
        %328 = vmatpush1.msra.mxu0 0.0
        %329 = vmatprep.mubr.f32.mxu0 0.0
        %330 = vmatmul.mubr.f32.gmra.mrb[0].mxu0 %v263
        %v331 = vpop.f32.mrb[0].mxu0
        %v332 = vadd.f32 0.0, %v331
        %v333 = vpop.f32.mrb[0].mxu0
        %334 = vdwg.mxu0
        %v335 = vrcp.pop %v260
        %v336 = vmul.f32 %v260, %v335
        %v337 = vsub.f32 2.0, %v336
        %v338 = vmul.f32 %v335, %v337
        %v339 = vmul.f32 %v332, %v338
        %vm340 = vcmask 257024
        %341 = vst.msk [vmem:[%s171] sm:$0xf] %vm340, %v339
        %s342 = sand.u32 %s75, 1
        %s343 = scalar_lea.sflag [#allocation4], %s342
        %s344 = sand.u32 %s75, 1
        %s345 = smul.addr %s344, 4
        %s346 = scalar_lea.vmem [#allocation7], %s345
        // Predicated region
        $region37: #{tpu_custom_call.1} parent=27 // pred_check
          %p347 = pneg %p85
        $region38: #{tpu_custom_call.1} parent=27 // pred_check_branch
          %349 = sbr.rel (%p347) target = $region40
        $region39: #{tpu_custom_call.1} parent=27 // pred_region
          %s351 = ssub.s32 64, 64
          %352 = vsyncadd %s343, %s351
          %s353 = smul.addr %s20, 64
          %s354 = scalar_lea.hbm %s2, %s353
          %s356 = sshll.u32 %s346, 4
          %s357 = int_to_ptr.vmem [resolvable:$true] %s356
          %359 = dma.vmem_to_hbm [thread:$0]  %s357, 64, %s354, %s343
        $region40: #{tpu_custom_call.1} parent=27 // pred_fallthru
          _
      $region28: #{tpu_custom_call.1} parent=5 // pred_fallthru
        _
      %p360 = scmp.le.s32.totalorder 2, %s15
      // Predicated region
      $region41: #{tpu_custom_call.1} parent=5 // pred_check
        %p361 = pneg %p360
      $region42: #{tpu_custom_call.1} parent=5 // pred_check_branch
        %363 = sbr.rel (%p361) target = $region44
      $region43: #{tpu_custom_call.1} parent=5 // pred_region
        %s364 = ssub.s32 %s15, 2
        // Predicated region
        $region45: #{tpu_custom_call.1} parent=43 // pred_check
          %p365 = pneg %p91
        $region46: #{tpu_custom_call.1} parent=43 // pred_check_branch
          %367 = sbr.rel (%p365) target = $region48
        $region47: #{tpu_custom_call.1} parent=43 // pred_region
          %s368 = sand.u32 %s76, 1
          %s369 = scalar_lea.sflag [#allocation4], %s368
          %s370 = sand.u32 %s76, 1
          %s371 = smul.addr %s370, 4
          %s372 = scalar_lea.vmem [#allocation7], %s371
          %373 = dma.done %s369, 64
        $region48: #{tpu_custom_call.1} parent=43 // pred_fallthru
          _
      $region44: #{tpu_custom_call.1} parent=5 // pred_fallthru
        _
    $region6: #{tpu_custom_call.1} parent=1 // loop_footer
      %s19 = sadd.s32 1, %s15
    $region7: #{tpu_custom_call.1} parent=1 // loop_footer_branch
      %14 = sbr.rel target = $region3
    $region8: #{tpu_custom_call.1} parent=1 // loop_exit
      _
    %374 = vsyncpa [#allocation3], 1
    %s375 = scalar_lea.sflag [#allocation3], 1
    %376 = vsyncpa %s375, 1
    %377 = vsyncpa [#allocation6], 1
    %s378 = scalar_lea.sflag [#allocation6], 1
    %379 = vsyncpa %s378, 1
    %380 = vsyncpa [#allocation4], 1
    %s381 = scalar_lea.sflag [#allocation4], 1
    %382 = vsyncpa %s381, 1

</llo_original>
